<compile_context>
chip_gen: v7x
topology: tpu7x:2x2x1
jax: 0.10.0
libtpu: 0.0.40
codegen_flags: <defaults>
</compile_context>

<pallas_src>
import functools

import jax
import jax.numpy as jnp
from jax.experimental import pallas as pl
from jax.experimental.pallas import tpu as pltpu

_MIB = 1024 * 1024


def _vmem_block_budget_bytes():
    """Byte budget for the 4 double-buffered block buffers (2 in + 2 out).

    Generation-aware: uses physical VMEM when queryable (64 MiB on v7x,
    128 MiB on v5e/v6e) and leaves ample headroom for compiler scratch."""
    cap = 64 * _MIB
    try:
        info = pltpu.get_tpu_info()
        cap = int(getattr(info, "vmem_capacity_bytes", cap) or cap)
    except Exception:
        pass
    return min(24 * _MIB, cap // 3)


def _l2n_kernel_sublanes(x_ref, o_ref, *, eps, approx):
    # x_ref / o_ref: (TILE_B, C, TILE_HW) block in VMEM. Reduce over C
    # (axis=1 of the original NCHW tensor), accumulating in f32.
    xf = x_ref[...].astype(jnp.float32)
    ssq = jnp.sum(xf * xf, axis=1, keepdims=True)            # (TILE_B, 1, TILE_HW)
    denom = jnp.sqrt(ssq) + eps                              # eps OUTSIDE sqrt (torch)
    inv = pl.reciprocal(denom, approx=approx)                # EUP slot
    o_ref[...] = (xf * inv).astype(o_ref.dtype)


def _l2n_kernel_lanes(x_ref, o_ref, *, eps, approx):
    # x_ref / o_ref: (TILE_B, C) block, C on lanes. Reduce over the last axis
    # (XLU cross-lane reduce). Used for 2-D inputs / H*W == 1.
    xf = x_ref[...].astype(jnp.float32)
    ssq = jnp.sum(xf * xf, axis=-1, keepdims=True)           # (TILE_B, 1)
    inv = pl.reciprocal(jnp.sqrt(ssq) + eps, approx=approx)
    o_ref[...] = (xf * inv).astype(o_ref.dtype)


def _l2n_2d(x2, eps, approx, budget):
    """(B, C) layout: C on lanes, batch tile on sublanes."""
    B, C = x2.shape
    elt = jnp.dtype(x2.dtype).itemsize
    target = max(_MIB, budget // 4)                          # one block buffer

    if B <= 8 or B * C * elt <= target:
        tile_b = B                                           # full extent
    else:
        tile_b = min(B, max(8, (target // (C * elt) // 8) * 8))
    grid = (pl.cdiv(B, tile_b),)

    kernel = functools.partial(_l2n_kernel_lanes, eps=eps, approx=approx)
    return pl.pallas_call(
        kernel,
        out_shape=jax.ShapeDtypeStruct((B, C), x2.dtype),
        grid_spec=pltpu.PrefetchScalarGridSpec(
            num_scalar_prefetch=0,
            grid=grid,
            in_specs=[pl.BlockSpec((tile_b, C), lambda b: (b, 0))],
            out_specs=pl.BlockSpec((tile_b, C), lambda b: (b, 0)),
        ),
        compiler_params=pltpu.CompilerParams(
            dimension_semantics=("parallel",),
            vmem_limit_bytes=int(budget + 8 * _MIB),
        ),
        cost_estimate=pl.CostEstimate(
            flops=3 * B * C,
            transcendentals=2 * B,
            bytes_accessed=2 * B * C * elt,
        ),
    )(x2)


def _l2n_3d(x3, eps, approx, budget):
    """(B, C, HW) layout: C on sublanes, fused spatial axis on lanes."""
    B, C, HW = x3.shape
    elt = jnp.dtype(x3.dtype).itemsize
    target = max(_MIB, budget // 4)                          # one block buffer

    # Spatial (lane) tile: full HW if it fits the per-block budget, otherwise
    # the largest multiple of 128 that fits (ragged last block handled by
    # Pallas; garbage lanes of the partial input block never mix across lanes
    # and are clipped on writeback).
    if HW <= 128 or C * HW * elt <= target:
        tile_hw = HW
    else:
        max_lanes = max(128, (target // (C * elt) // 128) * 128)
        tile_hw = max(128, min((HW // 128) * 128, max_lanes))

    # Batch tile: only worth it when the spatial axis is untiled and the
    # per-batch-entry block is far below the budget (small C / small HW).
    if tile_hw == HW:
        tile_b = max(1, min(B, target // max(1, C * tile_hw * elt)))
    else:
        tile_b = 1

    n_b = pl.cdiv(B, tile_b)
    n_s = pl.cdiv(HW, tile_hw)

    # Keep both v7x TensorCores busy: if everything collapsed into one grid
    # point but the tensor is non-trivial, split the batch tile.
    if n_b * n_s == 1 and B > 1 and B * C * HW * elt > 2 * _MIB:
        tile_b = pl.cdiv(B, 2)
        n_b = pl.cdiv(B, tile_b)

    kernel = functools.partial(_l2n_kernel_sublanes, eps=eps, approx=approx)
    return pl.pallas_call(
        kernel,
        out_shape=jax.ShapeDtypeStruct((B, C, HW), x3.dtype),
        grid_spec=pltpu.PrefetchScalarGridSpec(
            num_scalar_prefetch=0,
            grid=(n_b, n_s),
            in_specs=[pl.BlockSpec((tile_b, C, tile_hw), lambda b, s: (b, 0, s))],
            out_specs=pl.BlockSpec((tile_b, C, tile_hw), lambda b, s: (b, 0, s)),
        ),
        compiler_params=pltpu.CompilerParams(
            dimension_semantics=("parallel", "parallel"),
            vmem_limit_bytes=int(budget + 8 * _MIB),
        ),
        cost_estimate=pl.CostEstimate(
            flops=3 * B * C * HW,
            transcendentals=2 * B * HW,
            bytes_accessed=2 * B * C * HW * elt,
        ),
    )(x3)


def l2n_pallas(x, eps=1e-6, approx_recip=None):
    """L2-normalize over dim=1: x / (||x||_2(dim=1, keepdim) + eps).

    Supports (B, C) and (B, C, H, W) inputs, matching torch L2N semantics."""
    if approx_recip is None:
        # Exact reciprocal for f32 (cheap: one per pixel, EUP has slack);
        # approximate is fine for low-precision outputs.
        approx_recip = x.dtype != jnp.float32
    eps = float(eps)
    budget = _vmem_block_budget_bytes()

    if x.ndim == 2:
        return _l2n_2d(x, eps, approx_recip, budget)

    B, C, H, W = x.shape
    HW = H * W
    if HW == 1:
        # Descriptor normalization: C-on-lanes layout is lane-dense; the
        # C-on-sublanes layout would waste ~99% of every vreg/DMA byte.
        y = _l2n_2d(x.reshape(B, C), eps, approx_recip, budget)
        return y.reshape(B, C, H, W)

    y = _l2n_3d(x.reshape(B, C, HW), eps, approx_recip, budget)
    return y.reshape(B, C, H, W)


if __name__ == "__main__":
    key = jax.random.PRNGKey(0)

    # Feature-map case (NCHW).
    B, C, H, W = 2, 4, 16, 16
    x = jax.random.normal(key, (B, C, H, W), dtype=jnp.float32)
    y = jax.block_until_ready(l2n_pallas(x, eps=1e-6))
    norm = jnp.sqrt(jnp.sum(x * x, axis=1, keepdims=True))
    y_ref = x / (norm + 1e-6)
    assert jnp.allclose(y, y_ref, atol=1e-5, rtol=1e-5), (
        float(jnp.max(jnp.abs(y - y_ref)))
    )

    # Degenerate spatial case (descriptor normalization, H=W=1): lanes path.
    xd = jax.random.normal(jax.random.PRNGKey(1), (2, 32, 1, 1), dtype=jnp.float32)
    yd = jax.block_until_ready(l2n_pallas(xd, eps=1e-6))
    nd = jnp.sqrt(jnp.sum(xd * xd, axis=1, keepdims=True))
    yd_ref = xd / (nd + 1e-6)
    assert jnp.allclose(yd, yd_ref, atol=1e-5, rtol=1e-5), (
        float(jnp.max(jnp.abs(yd - yd_ref)))
    )

    print("KERNEL_OK")
</pallas_src>

<mosaic_0001>
module attributes {stable_mosaic.version = 11 : i64} {
  func.func @_l2n_kernel_sublanes(%arg0: i32, %arg1: i32, %arg2: memref<2x4x256xf32, #tpu.memory_space<vmem>>, %arg3: memref<2x4x256xf32, #tpu.memory_space<vmem>>) attributes {dimension_semantics = [#tpu.dimension_semantics<parallel>, #tpu.dimension_semantics<parallel>], iteration_bounds = array<i64: 1, 1>, scalar_prefetch = 0 : i64, scratch_operands = 0 : i64, tpu.core_type = #tpu.core_type<tc>, window_params = [{transform_indices = @transform_0, window_bounds = array<i64: 2, 4, 256>}, {transform_indices = @transform_1, window_bounds = array<i64: 2, 4, 256>}]} {
    %c0 = arith.constant 0 : index
    %c0_0 = arith.constant 0 : index
    %c0_1 = arith.constant 0 : index
    %0 = vector.load %arg2[%c0, %c0_0, %c0_1] : memref<2x4x256xf32, #tpu.memory_space<vmem>>, vector<2x4x256xf32>
    %1 = arith.mulf %0, %0 : vector<2x4x256xf32>
    %cst = arith.constant dense<0.000000e+00> : vector<2x256xf32>
    %2 = vector.multi_reduction <add>, %1, %cst [1] : vector<2x4x256xf32> to vector<2x256xf32>
    %3 = vector.shape_cast %2 : vector<2x256xf32> to vector<2x1x256xf32>
    %4 = math.sqrt %3 : vector<2x1x256xf32>
    %cst_2 = arith.constant 9.99999997E-7 : f32
    %5 = vector.broadcast %cst_2 : f32 to vector<2x1x256xf32>
    %6 = arith.addf %4, %5 : vector<2x1x256xf32>
    %7 = tpu.reciprocal %6 : vector<2x1x256xf32> -> vector<2x1x256xf32>
    %8 = vector.broadcast %7 : vector<2x1x256xf32> to vector<2x4x256xf32>
    %9 = arith.mulf %0, %8 : vector<2x4x256xf32>
    %c0_3 = arith.constant 0 : index
    %c0_4 = arith.constant 0 : index
    %c0_5 = arith.constant 0 : index
    %10 = vector.load %arg3[%c0_3, %c0_4, %c0_5] : memref<2x4x256xf32, #tpu.memory_space<vmem>>, vector<2x4x256xf32>
    tpu.vector_store %arg3[%c0_3, %c0_4, %c0_5], %9 {strides = array<i32>} : memref<2x4x256xf32, #tpu.memory_space<vmem>>, vector<2x4x256xf32>,
    return
  }
  func.func @transform_0(%arg0: i32, %arg1: i32) -> (i32, i32, i32) {
    %c0_i32 = arith.constant 0 : i32
    %c0_i32_0 = arith.constant 0 : i32
    return %arg0, %c0_i32, %arg1 : i32, i32, i32
  }
  func.func @transform_1(%arg0: i32, %arg1: i32) -> (i32, i32, i32) {
    %c0_i32 = arith.constant 0 : i32
    %c0_i32_0 = arith.constant 0 : i32
    return %arg0, %c0_i32, %arg1 : i32, i32, i32
  }
}

</mosaic_0001>

<llo_original>
// kernel: tpu_custom_call.1
$region0: #{tpu_custom_call.1}
  #allocation0 [shape = 'u32[]', space=smem, size = 0x4, offset = 0x4, fixed_abs, tag = 'smem constant byte address 0x4 - core index']
  #allocation1 [shape = 'u32[144,128]{1,0:T(1,128)}', space=vmem, size = 0x12000, scoped, tag = 'internal scratch']
  %s0 = inlined_call_operand.hbm [shape: f32[2,4,256], index: 0, kind: input, shape index: {}]
  %s1 = inlined_call_operand.hbm [shape: f32[2,4,256], index: 1, kind: output, shape index: {}]
  %s2 = sld [smem:[#allocation0]]
  $region18: #{tpu_custom_call.1} parent=0
    _
  %s4 = ssub.s32 1, %s2
  %s5 = scalar_select 0, %s4, %s2
  $region1: #{tpu_custom_call.1} parent=0
    #allocation2 [shape = 'u8[8192]{0}', space=vmem, size = 0x2000, scoped, tag = 'input window, operand 0, single buffered']
    #allocation3 [shape = 's32[1]{0}', space=sflag, size = 0x4, scoped, tag = 'scoped memory for tpu_custom_call.1']
    #allocation4 [shape = 's32[1]{0}', space=sflag, size = 0x4, scoped, tag = 'scoped memory for tpu_custom_call.1']
    #allocation5 [shape = 'u8[8192]{0}', space=vmem, size = 0x2000, scoped, tag = 'output window, operand 0, single buffered']
    %6 = vsyncpa [#allocation3], 0
    %7 = vsyncpa [#allocation4], 0
    // Predicated region
    $region2: #{tpu_custom_call.1} parent=1 // pred_check
      _
    $region3: #{tpu_custom_call.1} parent=1 // pred_check_branch
      %9 = sbr.rel (0) target = $region5
    $region4: #{tpu_custom_call.1} parent=1 // pred_region
      %s11 = ssub.s32 256, 256
      %12 = vsyncadd [#allocation3], %s11
      %s13 = sshll.u32 [#allocation2], 4
      %s14 = int_to_ptr.vmem [resolvable:$true] %s13
      %19 = dma.hbm_to_vmem [thread:$0]  %s0, 256, %s14, [#allocation3], 128, 128, 8
    $region5: #{tpu_custom_call.1} parent=1 // pred_fallthru
      _
    // Predicated region
    $region6: #{tpu_custom_call.1} parent=1 // pred_check
      _
    $region7: #{tpu_custom_call.1} parent=1 // pred_check_branch
      %21 = sbr.rel (0) target = $region9
    $region8: #{tpu_custom_call.1} parent=1 // pred_region
      %22 = dma.done [#allocation3], 256
    $region9: #{tpu_custom_call.1} parent=1 // pred_fallthru
      _
    %v23 = vld [vmem:[#allocation2] sm:$0xff]
    %v24 = vld [vmem:[#allocation2 + $0x8] sm:$0xff]
    %v25 = vmul.f32 %v23, %v23
    %v26 = vmul.f32 %v24, %v24
    %v29 = vcombine.high %v25, %v25
    %v30 = vcombine.high %v26, %v26
    %vm33 = vcmask 1043456
    %v34 = vsel %vm33, %v25, 0.0
    %v35 = vrot.slane %v34, 4
    %v36 = vadd.f32 %v34, %v35
    %v37 = vrot.slane %v36, 2
    %v38 = vadd.f32 %v36, %v37
    %v39 = vrot.slane %v38, 1
    %v40 = vadd.f32 %v38, %v39
    %v41 = vsel %vm33, %v29, 0.0
    %v42 = vrot.slane %v41, 4
    %v43 = vadd.f32 %v41, %v42
    %v44 = vrot.slane %v43, 2
    %v45 = vadd.f32 %v43, %v44
    %v46 = vrot.slane %v45, 1
    %v47 = vadd.f32 %v45, %v46
    %v48 = vsel %vm33, %v26, 0.0
    %v49 = vrot.slane %v48, 4
    %v50 = vadd.f32 %v48, %v49
    %v51 = vrot.slane %v50, 2
    %v52 = vadd.f32 %v50, %v51
    %v53 = vrot.slane %v52, 1
    %v54 = vadd.f32 %v52, %v53
    %v55 = vsel %vm33, %v30, 0.0
    %v56 = vrot.slane %v55, 4
    %v57 = vadd.f32 %v55, %v56
    %v58 = vrot.slane %v57, 2
    %v59 = vadd.f32 %v57, %v58
    %v60 = vrot.slane %v59, 1
    %v61 = vadd.f32 %v59, %v60
    %v62 = vrsqrt.pop %v40
    %v63 = vmul.f32 %v40, %v62
    %vm64 = vcmp.eq.f32.partialorder %v40, inf
    %v65 = vsel %vm64, %v40, %v63
    %vm66 = vcmp.eq.f32.partialorder %v40, 0.0
    %v67 = vand.u32 %v40, 2147483648
    %v68 = vsel %vm66, %v67, %v65
    %v69 = vrsqrt.pop %v47
    %v70 = vmul.f32 %v47, %v69
    %vm71 = vcmp.eq.f32.partialorder %v47, inf
    %v72 = vsel %vm71, %v47, %v70
    %vm73 = vcmp.eq.f32.partialorder %v47, 0.0
    %v74 = vand.u32 %v47, 2147483648
    %v75 = vsel %vm73, %v74, %v72
    %v76 = vrsqrt.pop %v54
    %v77 = vmul.f32 %v54, %v76
    %vm78 = vcmp.eq.f32.partialorder %v54, inf
    %v79 = vsel %vm78, %v54, %v77
    %vm80 = vcmp.eq.f32.partialorder %v54, 0.0
    %v81 = vand.u32 %v54, 2147483648
    %v82 = vsel %vm80, %v81, %v79
    %v83 = vrsqrt.pop %v61
    %v84 = vmul.f32 %v61, %v83
    %vm85 = vcmp.eq.f32.partialorder %v61, inf
    %v86 = vsel %vm85, %v61, %v84
    %vm87 = vcmp.eq.f32.partialorder %v61, 0.0
    %v88 = vand.u32 %v61, 2147483648
    %v89 = vsel %vm87, %v88, %v86
    %v90 = vadd.f32 %v68, 1e-06
    %v91 = vadd.f32 %v75, 1e-06
    %v92 = vadd.f32 %v82, 1e-06
    %v93 = vadd.f32 %v89, 1e-06
    %v94 = vrcp.pop %v90
    %v95 = vrcp.pop %v91
    %v96 = vrcp.pop %v92
    %v97 = vrcp.pop %v93
    %v102 = vcombine.low %v94, %v95
    %v103 = vcombine.low %v96, %v97
    %v106 = vmul.f32 %v23, %v102
    %v107 = vmul.f32 %v24, %v103
    %108 = vst [vmem:[#allocation5] sm:$0xff] %v106
    %109 = vst [vmem:[#allocation5 + $0x8] sm:$0xff] %v107
    // Predicated region
    $region10: #{tpu_custom_call.1} parent=1 // pred_check
      _
    $region11: #{tpu_custom_call.1} parent=1 // pred_check_branch
      %111 = sbr.rel (0) target = $region13
    $region12: #{tpu_custom_call.1} parent=1 // pred_region
      %s113 = ssub.s32 256, 256
      %114 = vsyncadd [#allocation4], %s113
      %s115 = sshll.u32 [#allocation5], 4
      %s116 = int_to_ptr.vmem [resolvable:$true] %s115
      %121 = dma.vmem_to_hbm [thread:$0]  %s116, 256, %s1, [#allocation4], 128, 128, 8
    $region13: #{tpu_custom_call.1} parent=1 // pred_fallthru
      _
    // Predicated region
    $region14: #{tpu_custom_call.1} parent=1 // pred_check
      _
    $region15: #{tpu_custom_call.1} parent=1 // pred_check_branch
      %123 = sbr.rel (0) target = $region17
    $region16: #{tpu_custom_call.1} parent=1 // pred_region
      %124 = dma.done [#allocation4], 256
    $region17: #{tpu_custom_call.1} parent=1 // pred_fallthru
      _
    %125 = vsyncpa [#allocation3], 1
    %126 = vsyncpa [#allocation4], 1

</llo_original>
